<compile_context>
chip_gen: v7x
topology: tpu7x:2x2x1
jax: 0.10.0
libtpu: 0.0.40
codegen_flags: <defaults>
</compile_context>

<pallas_src>
import jax
import jax.numpy as jnp
from jax.experimental import pallas as pl
from jax.experimental.pallas import tpu as pltpu


# ----------------------------- kernel ---------------------------------------


def _sparse_elbo_kernel(var_ref, sx_ref, x2_ref, sv_ref, v2_ref, zat_ref,
                        m_ref, k_ref):
    # var_ref: (1,)      kernel variance (SMEM scalar)
    # sx_ref:  (D,  TN)  tile of (X / lengthscale).T   (lane-dense, precomputed)
    # x2_ref:  (1,  TN)  tile of column norms of sx    (precomputed)
    # sv_ref:  (Np, D)   V / lengthscale               (grid-invariant)
    # v2_ref:  (Np, 1)   row norms of sv               (grid-invariant)
    # zat_ref: (Np, TN)  tile of (Z @ A.T).T           (lane-dense)
    # m_ref/k_ref: (Np, TN) lane-dense output tiles
    xv = jnp.dot(sv_ref[...], sx_ref[...],                      # (Np, TN) MXU
                 preferred_element_type=jnp.float32)
    r2 = jnp.maximum(v2_ref[...] + x2_ref[...] - 2.0 * xv, 0.0)  # pyro clamps r2 >= 0
    k = var_ref[0] * jnp.exp(-0.5 * r2)                          # f32 exp on the EUP
    m_ref[...] = k * (zat_ref[...] - 0.5 * k)                    # == -(k^2 - 2 k zat)/2
    k_ref[...] = k


# ------------------------ hardware-aware tile selection ----------------------


def _round_up(x, m):
    return ((x + m - 1) // m) * m


def _num_tensorcores():
    """Per-chip TensorCore count (1 on v5e/v6e, 2 on v7x). Perf heuristic only."""
    try:
        info = pltpu.get_tpu_info()
        for name in ("num_cores", "core_count", "tensorcores_per_chip",
                     "num_tensor_cores", "tensor_core_count"):
            v = getattr(info, name, None)
            if isinstance(v, int) and v > 0:
                return v
    except Exception:
        pass
    try:
        kind = getattr(jax.devices()[0], "device_kind", "").lower()
        if "v7" in kind:
            return 2
    except Exception:
        pass
    return 1


def _vmem_capacity_bytes():
    try:
        cap = getattr(pltpu.get_tpu_info(), "vmem_capacity_bytes", None)
        if isinstance(cap, int) and cap > 0:
            return cap
    except Exception:
        pass
    return 64 * 1024 * 1024  # conservative floor (v7x per-TC VMEM)


def _select_tile(n, d, np_, tile_n):
    """Pick lane-tile size, grid length and (optional) vmem_limit_bytes."""
    per_col_bytes = 4 * (d + 1 + 3 * np_)        # sx_t + x2 + zat + M + K columns
    vmem_cap = _vmem_capacity_bytes()
    budget = min(vmem_cap // 2, 48 * 1024 * 1024)
    max_cols = max(128, (budget // (2 * per_col_bytes)) // 128 * 128)

    tile = max(128, min(int(tile_n), 16384))
    tile = (tile // 128) * 128
    tile = min(tile, _round_up(n, 128), max_cols)

    cores = _num_tensorcores()
    if cores > 1:
        target = 2 * cores                       # keep every TensorCore fed & balanced
        if pl.cdiv(n, tile) < target and n > 128 * target:
            tile = _round_up(pl.cdiv(n, target), 128)

    grid_n = pl.cdiv(n, tile)
    if grid_n == 1:
        tile = n                                 # full-extent block: no overhang at all

    working_set = 2 * per_col_bytes * tile + 4 * np_ * (d + 1) + (1 << 20)
    vmem_limit = None
    if working_set > 12 * 1024 * 1024:           # above v5e's 16 MiB scoped default
        vmem_limit = min(int(working_set * 1.5) + (4 << 20), int(0.75 * vmem_cap))
    return tile, grid_n, vmem_limit


# ------------------------------ module --------------------------------------


class SparseELBOPallas:
    """Pallas-TPU forward of SparseELBO. X, V, lengthscale, variance fixed at init."""

    def __init__(self, X, V, fs=True, *, tile_n=8192):
        X = jnp.asarray(X, jnp.float32)          # (N, D)
        V = jnp.asarray(V, jnp.float32)          # (Np, D)
        n, d = X.shape
        np_, d2 = V.shape
        assert d == d2
        self.n, self.d, self.np_ = n, d, np_

        # fs branches of the PyTorch __init__.
        if fs:
            variance = 1.0
            lengthscale = (d / 10.0) * jnp.ones((d,), jnp.float32)
        else:
            variance = 0.01
            lengthscale = jnp.ones((d,), jnp.float32)
        inv_ls = (1.0 / lengthscale).reshape(d, 1)

        # One-time, grid-invariant precompute (was per-grid-step work before).
        self.var = jnp.asarray(variance, jnp.float32).reshape(1)
        self.sx_t = X.T * inv_ls                                         # (D, N)
        self.x2 = jnp.sum(self.sx_t * self.sx_t, axis=0, keepdims=True)  # (1, N)
        self.sv = V * inv_ls.T                                           # (Np, D)
        self.v2 = jnp.sum(self.sv * self.sv, axis=1, keepdims=True)      # (Np, 1)

        tile, grid_n, vmem_limit = _select_tile(n, d, np_, tile_n)
        self.tile_n, self.grid_n = tile, grid_n

        cp_kwargs = dict(dimension_semantics=("parallel",))
        if vmem_limit is not None:
            cp_kwargs["vmem_limit_bytes"] = vmem_limit

        # NOTE: Np is the sublane dim of the output blocks; for arbitrary Np that
        # is not a multiple of 8 pad sv/v2/zat_t/outputs at init if needed.
        self._call = pl.pallas_call(
            _sparse_elbo_kernel,
            out_shape=(jax.ShapeDtypeStruct((np_, n), jnp.float32),   # M.T
                       jax.ShapeDtypeStruct((np_, n), jnp.float32)),  # K.T
            grid=(grid_n,),
            in_specs=[
                pl.BlockSpec(memory_space=pltpu.MemorySpace.SMEM),    # variance
                pl.BlockSpec((d, tile), lambda i: (0, i)),            # sx_t tile
                pl.BlockSpec((1, tile), lambda i: (0, i)),            # x2 tile
                pl.BlockSpec((np_, d), lambda i: (0, 0)),             # sv (invariant)
                pl.BlockSpec((np_, 1), lambda i: (0, 0)),             # v2 (invariant)
                pl.BlockSpec((np_, tile), lambda i: (0, i)),          # ZAT.T tile
            ],
            out_specs=[
                pl.BlockSpec((np_, tile), lambda i: (0, i)),          # M.T tile
                pl.BlockSpec((np_, tile), lambda i: (0, i)),          # K.T tile
            ],
            compiler_params=pltpu.CompilerParams(**cp_kwargs),
        )

    def forward_t(self, zat_t):
        """Primary lane-dense API. zat_t: (Np, N) = A @ Z.T. Returns (M.T, K.T)."""
        zat_t = jnp.asarray(zat_t, jnp.float32)
        assert zat_t.shape == (self.np_, self.n)
        return self._call(self.var, self.sx_t, self.x2, self.sv, self.v2, zat_t)

    def forward(self, zat):
        """PyTorch-layout compat shim: zat (N, Np) -> (M, K), each (N, Np).
        Pays two full-array transposes; prefer forward_t for production use."""
        m_t, k_t = self.forward_t(jnp.asarray(zat, jnp.float32).T)
        return m_t.T, k_t.T

    # TODO(synk): get_params / sgd_step (Adam loop, unconstrained-parameter
    # transforms) stay host-side; only the forward pass is a Pallas kernel.


# ------------------------------ reference -----------------------------------


def _reference(x, v, zat, lengthscale, variance):
    sx = x / lengthscale
    sv = v / lengthscale
    r2 = (jnp.sum(sx * sx, -1)[:, None]
          + jnp.sum(sv * sv, -1)[None, :]
          - 2.0 * sx @ sv.T)
    r2 = jnp.maximum(r2, 0.0)
    k = variance * jnp.exp(-0.5 * r2)
    m = -(k ** 2 - 2.0 * k * zat) / 2.0
    return m, k


if __name__ == "__main__":
    key = jax.random.PRNGKey(0)

    def run_case(key, N, Np, D, tile_n=8192):
        kx, kv, kz = jax.random.split(key, 3)
        X = jax.random.normal(kx, (N, D), dtype=jnp.float32)
        V = jax.random.normal(kv, (Np, D), dtype=jnp.float32)
        ZAT = jax.random.normal(kz, (N, Np), dtype=jnp.float32)

        mod = SparseELBOPallas(X, V, fs=True, tile_n=tile_n)

        # Primary lane-dense path: caller supplies ZAT already as (Np, N).
        M_t, K_t = mod.forward_t(ZAT.T)
        jax.block_until_ready((M_t, K_t))

        lengthscale = (D / 10.0) * jnp.ones((D,), jnp.float32)
        M_ref, K_ref = _reference(X, V, ZAT, lengthscale, 1.0)
        assert jnp.allclose(M_t.T, M_ref, atol=1e-5, rtol=1e-5)
        assert jnp.allclose(K_t.T, K_ref, atol=1e-5, rtol=1e-5)

        # PyTorch-layout compatibility shim.
        M, K = mod.forward(ZAT)
        jax.block_until_ready((M, K))
        assert jnp.allclose(M, M_ref, atol=1e-5, rtol=1e-5)
        assert jnp.allclose(K, K_ref, atol=1e-5, rtol=1e-5)

    k1, k2, k3 = jax.random.split(key, 3)
    run_case(k1, N=1024, Np=16, D=32)              # divisible N, big default tiles
    run_case(k2, N=200, Np=16, D=32)               # single full-extent block (no pad)
    run_case(k3, N=200, Np=16, D=32, tile_n=128)   # ragged tail via partial-block masking

    print("KERNEL_OK")
</pallas_src>

<mosaic_0001>
module attributes {stable_mosaic.version = 11 : i64} {
  func.func @_sparse_elbo_kernel(%arg0: i32, %arg1: memref<1xf32, #tpu.memory_space<smem>>, %arg2: memref<32x1024xf32, #tpu.memory_space<vmem>>, %arg3: memref<1x1024xf32, #tpu.memory_space<vmem>>, %arg4: memref<16x32xf32, #tpu.memory_space<vmem>>, %arg5: memref<16x1xf32, #tpu.memory_space<vmem>>, %arg6: memref<16x1024xf32, #tpu.memory_space<vmem>>, %arg7: memref<16x1024xf32, #tpu.memory_space<vmem>>, %arg8: memref<16x1024xf32, #tpu.memory_space<vmem>>) attributes {dimension_semantics = [#tpu.dimension_semantics<parallel>], iteration_bounds = array<i64: 1>, scalar_prefetch = 0 : i64, scratch_operands = 0 : i64, tpu.core_type = #tpu.core_type<tc>, window_params = [{transform_indices = @transform_0, window_bounds = array<i64: 1>}, {transform_indices = @transform_1, window_bounds = array<i64: 32, 1024>}, {transform_indices = @transform_2, window_bounds = array<i64: 1, 1024>}, {pipeline_mode = #tpu.pipeline_mode<synchronous>, transform_indices = @transform_3, window_bounds = array<i64: 16, 32>}, {pipeline_mode = #tpu.pipeline_mode<synchronous>, transform_indices = @transform_4, window_bounds = array<i64: 16, 1>}, {transform_indices = @transform_5, window_bounds = array<i64: 16, 1024>}, {transform_indices = @transform_6, window_bounds = array<i64: 16, 1024>}, {transform_indices = @transform_7, window_bounds = array<i64: 16, 1024>}]} {
    %c0 = arith.constant 0 : index
    %c0_0 = arith.constant 0 : index
    %0 = vector.load %arg4[%c0, %c0_0] : memref<16x32xf32, #tpu.memory_space<vmem>>, vector<16x32xf32>
    %c0_1 = arith.constant 0 : index
    %c0_2 = arith.constant 0 : index
    %1 = vector.load %arg2[%c0_1, %c0_2] : memref<32x1024xf32, #tpu.memory_space<vmem>>, vector<32x1024xf32>
    %cst = arith.constant dense<0.000000e+00> : vector<16x1024xf32>
    %2 = tpu.matmul %0, %1, %cst {dimension_numbers = #tpu.dot_dimension_numbers<[1], [0], [0], [1], [0, 0, 1, 1], [], []>} : vector<16x32xf32>, vector<32x1024xf32>, vector<16x1024xf32> -> vector<16x1024xf32>
    %c0_3 = arith.constant 0 : index
    %c0_4 = arith.constant 0 : index
    %3 = vector.load %arg5[%c0_3, %c0_4] : memref<16x1xf32, #tpu.memory_space<vmem>>, vector<16x1xf32>
    %c0_5 = arith.constant 0 : index
    %c0_6 = arith.constant 0 : index
    %4 = vector.load %arg3[%c0_5, %c0_6] : memref<1x1024xf32, #tpu.memory_space<vmem>>, vector<1x1024xf32>
    %5 = vector.broadcast %3 : vector<16x1xf32> to vector<16x1024xf32>
    %6 = vector.broadcast %4 : vector<1x1024xf32> to vector<16x1024xf32>
    %7 = arith.addf %5, %6 : vector<16x1024xf32>
    %cst_7 = arith.constant 2.000000e+00 : f32
    %8 = vector.broadcast %cst_7 : f32 to vector<16x1024xf32>
    %9 = arith.mulf %8, %2 : vector<16x1024xf32>
    %10 = arith.subf %7, %9 : vector<16x1024xf32>
    %cst_8 = arith.constant 0.000000e+00 : f32
    %11 = vector.broadcast %cst_8 : f32 to vector<16x1024xf32>
    %12 = arith.maximumf %10, %11 : vector<16x1024xf32>
    %c0_9 = arith.constant 0 : index
    %13 = memref.load %arg1[%c0_9] : memref<1xf32, #tpu.memory_space<smem>>
    %cst_10 = arith.constant -5.000000e-01 : f32
    %14 = vector.broadcast %cst_10 : f32 to vector<16x1024xf32>
    %15 = arith.mulf %14, %12 : vector<16x1024xf32>
    %16 = math.exp %15 : vector<16x1024xf32>
    %17 = vector.broadcast %13 : f32 to vector<16x1024xf32>
    %18 = arith.mulf %17, %16 : vector<16x1024xf32>
    %c0_11 = arith.constant 0 : index
    %c0_12 = arith.constant 0 : index
    %19 = vector.load %arg6[%c0_11, %c0_12] : memref<16x1024xf32, #tpu.memory_space<vmem>>, vector<16x1024xf32>
    %cst_13 = arith.constant 5.000000e-01 : f32
    %20 = vector.broadcast %cst_13 : f32 to vector<16x1024xf32>
    %21 = arith.mulf %20, %18 : vector<16x1024xf32>
    %22 = arith.subf %19, %21 : vector<16x1024xf32>
    %23 = arith.mulf %18, %22 : vector<16x1024xf32>
    %c0_14 = arith.constant 0 : index
    %c0_15 = arith.constant 0 : index
    %24 = vector.load %arg7[%c0_14, %c0_15] : memref<16x1024xf32, #tpu.memory_space<vmem>>, vector<16x1024xf32>
    tpu.vector_store %arg7[%c0_14, %c0_15], %23 {strides = array<i32>} : memref<16x1024xf32, #tpu.memory_space<vmem>>, vector<16x1024xf32>,
    %c0_16 = arith.constant 0 : index
    %c0_17 = arith.constant 0 : index
    %25 = vector.load %arg8[%c0_16, %c0_17] : memref<16x1024xf32, #tpu.memory_space<vmem>>, vector<16x1024xf32>
    tpu.vector_store %arg8[%c0_16, %c0_17], %18 {strides = array<i32>} : memref<16x1024xf32, #tpu.memory_space<vmem>>, vector<16x1024xf32>,
    return
  }
  func.func @transform_0(%arg0: i32) -> i32 {
    %c0_i32 = arith.constant 0 : i32
    %c0_i32_0 = arith.constant 0 : i32
    return %c0_i32 : i32
  }
  func.func @transform_1(%arg0: i32) -> (i32, i32) {
    %c0_i32 = arith.constant 0 : i32
    %c0_i32_0 = arith.constant 0 : i32
    return %c0_i32, %arg0 : i32, i32
  }
  func.func @transform_2(%arg0: i32) -> (i32, i32) {
    %c0_i32 = arith.constant 0 : i32
    %c0_i32_0 = arith.constant 0 : i32
    return %c0_i32, %arg0 : i32, i32
  }
  func.func @transform_3(%arg0: i32) -> (i32, i32) {
    %c0_i32 = arith.constant 0 : i32
    %c0_i32_0 = arith.constant 0 : i32
    %c0_i32_1 = arith.constant 0 : i32
    return %c0_i32, %c0_i32_0 : i32, i32
  }
  func.func @transform_4(%arg0: i32) -> (i32, i32) {
    %c0_i32 = arith.constant 0 : i32
    %c0_i32_0 = arith.constant 0 : i32
    %c0_i32_1 = arith.constant 0 : i32
    return %c0_i32, %c0_i32_0 : i32, i32
  }
  func.func @transform_5(%arg0: i32) -> (i32, i32) {
    %c0_i32 = arith.constant 0 : i32
    %c0_i32_0 = arith.constant 0 : i32
    return %c0_i32, %arg0 : i32, i32
  }
  func.func @transform_6(%arg0: i32) -> (i32, i32) {
    %c0_i32 = arith.constant 0 : i32
    %c0_i32_0 = arith.constant 0 : i32
    return %c0_i32, %arg0 : i32, i32
  }
  func.func @transform_7(%arg0: i32) -> (i32, i32) {
    %c0_i32 = arith.constant 0 : i32
    %c0_i32_0 = arith.constant 0 : i32
    return %c0_i32, %arg0 : i32, i32
  }
}

</mosaic_0001>

<llo_original>
// kernel: tpu_custom_call.1
$region0: #{tpu_custom_call.1}
  #allocation0 [shape = 'u32[]', space=smem, size = 0x4, offset = 0x4, fixed_abs, tag = 'smem constant byte address 0x4 - core index']
  #allocation1 [shape = 'u32[144,128]{1,0:T(1,128)}', space=vmem, size = 0x12000, scoped, tag = 'internal scratch']
  #allocation2 [shape = 'f32[1]{0:T(128)S(6)}', space=smem, size = 0x200, scoped, tag = 'scoped memory for tpu_custom_call.1']
  %s0 = inlined_call_operand.<no memory space> [shape: f32[1], index: 0, kind: input, shape index: {}]
  %s1 = inlined_call_operand.hbm [shape: f32[32,1024], index: 1, kind: input, shape index: {}]
  %s2 = inlined_call_operand.vmem [shape: f32[1,1024], index: 2, kind: input, shape index: {}]
  %s3 = inlined_call_operand.vmem [shape: f32[16,32], index: 3, kind: input, shape index: {}]
  %s4 = inlined_call_operand.vmem [shape: f32[16,1], index: 4, kind: input, shape index: {}]
  %s5 = inlined_call_operand.hbm [shape: f32[16,1024], index: 5, kind: input, shape index: {}]
  %s6 = inlined_call_operand.hbm [shape: f32[16,1024], index: 6, kind: output, shape index: {0}]
  %s7 = inlined_call_operand.hbm [shape: f32[16,1024], index: 7, kind: output, shape index: {1}]
  %8 = xla_tuple %s6, %s7
  %s9 = sld [smem:[#allocation0]]
  $region50: #{tpu_custom_call.1} parent=0
    _
  %s11 = ssub.s32 1, %s9
  %s12 = scalar_select 0, %s11, %s9
  %13 = sst [smem:[#allocation2]] %s0
  $region1: #{tpu_custom_call.1} parent=0
    #allocation3 [shape = 'u8[131072]{0}', space=vmem, size = 0x20000, scoped, tag = 'input window, operand 1, single buffered']
    #allocation4 [shape = 's32[1]{0}', space=sflag, size = 0x4, scoped, tag = 'scoped memory for tpu_custom_call.1']
    #allocation5 [shape = 's32[1]{0}', space=sflag, size = 0x4, scoped, tag = 'scoped memory for tpu_custom_call.1']
    #allocation6 [shape = 'u8[65536]{0}', space=vmem, size = 0x10000, scoped, tag = 'input window, operand 5, single buffered']
    #allocation7 [shape = 's32[1]{0}', space=sflag, size = 0x4, scoped, tag = 'scoped memory for tpu_custom_call.1']
    #allocation8 [shape = 'u8[65536]{0}', space=vmem, size = 0x10000, scoped, tag = 'output window, operand 0, single buffered']
    #allocation9 [shape = 'u8[65536]{0}', space=vmem, size = 0x10000, scoped, tag = 'output window, operand 1, single buffered']
    #allocation10 [shape = 's32[1]{0}', space=sflag, size = 0x4, scoped, tag = 'scoped memory for tpu_custom_call.1']
    %14 = vsyncpa [#allocation4], 0
    %15 = vsyncpa [#allocation7], 0
    %16 = vsyncpa [#allocation5], 0
    %17 = vsyncpa [#allocation10], 0
    // Predicated region
    $region2: #{tpu_custom_call.1} parent=1 // pred_check
      _
    $region3: #{tpu_custom_call.1} parent=1 // pred_check_branch
      %19 = sbr.rel (0) target = $region5
    $region4: #{tpu_custom_call.1} parent=1 // pred_region
      _
    $region5: #{tpu_custom_call.1} parent=1 // pred_fallthru
      _
    // Predicated region
    $region6: #{tpu_custom_call.1} parent=1 // pred_check
      _
    $region7: #{tpu_custom_call.1} parent=1 // pred_check_branch
      %21 = sbr.rel (0) target = $region9
    $region8: #{tpu_custom_call.1} parent=1 // pred_region
      %s23 = ssub.s32 4096, 4096
      %24 = vsyncadd [#allocation4], %s23
      %s25 = sshll.u32 [#allocation3], 4
      %s26 = int_to_ptr.vmem [resolvable:$true] %s25
      %31 = dma.hbm_to_vmem [thread:$0]  %s1, 4096, %s26, [#allocation4], 1024, 1024, 64
    $region9: #{tpu_custom_call.1} parent=1 // pred_fallthru
      _
    // Predicated region
    $region10: #{tpu_custom_call.1} parent=1 // pred_check
      _
    $region11: #{tpu_custom_call.1} parent=1 // pred_check_branch
      %33 = sbr.rel (0) target = $region13
    $region12: #{tpu_custom_call.1} parent=1 // pred_region
      _
    $region13: #{tpu_custom_call.1} parent=1 // pred_fallthru
      _
    // Predicated region
    $region14: #{tpu_custom_call.1} parent=1 // pred_check
      _
    $region15: #{tpu_custom_call.1} parent=1 // pred_check_branch
      %35 = sbr.rel (0) target = $region17
    $region16: #{tpu_custom_call.1} parent=1 // pred_region
      _
    $region17: #{tpu_custom_call.1} parent=1 // pred_fallthru
      _
    // Predicated region
    $region18: #{tpu_custom_call.1} parent=1 // pred_check
      _
    $region19: #{tpu_custom_call.1} parent=1 // pred_check_branch
      %37 = sbr.rel (0) target = $region21
    $region20: #{tpu_custom_call.1} parent=1 // pred_region
      _
    $region21: #{tpu_custom_call.1} parent=1 // pred_fallthru
      _
    // Predicated region
    $region22: #{tpu_custom_call.1} parent=1 // pred_check
      _
    $region23: #{tpu_custom_call.1} parent=1 // pred_check_branch
      %39 = sbr.rel (0) target = $region25
    $region24: #{tpu_custom_call.1} parent=1 // pred_region
      %s41 = ssub.s32 2048, 2048
      %42 = vsyncadd [#allocation7], %s41
      %s43 = sshll.u32 [#allocation6], 4
      %s44 = int_to_ptr.vmem [resolvable:$true] %s43
      %49 = dma.hbm_to_vmem [thread:$0]  %s5, 2048, %s44, [#allocation7], 1024, 1024, 64
    $region25: #{tpu_custom_call.1} parent=1 // pred_fallthru
      _
    // Predicated region
    $region26: #{tpu_custom_call.1} parent=1 // pred_check
      _
    $region27: #{tpu_custom_call.1} parent=1 // pred_check_branch
      %51 = sbr.rel (0) target = $region29
    $region28: #{tpu_custom_call.1} parent=1 // pred_region
      %52 = dma.done [#allocation4], 4096
    $region29: #{tpu_custom_call.1} parent=1 // pred_fallthru
      _
    // Predicated region
    $region30: #{tpu_custom_call.1} parent=1 // pred_check
      _
    $region31: #{tpu_custom_call.1} parent=1 // pred_check_branch
      %54 = sbr.rel (0) target = $region33
    $region32: #{tpu_custom_call.1} parent=1 // pred_region
      %55 = dma.done [#allocation7], 2048
    $region33: #{tpu_custom_call.1} parent=1 // pred_fallthru
      _
    %v56 = vld [vmem:[%s3] sm:$0xff]
    %v57 = vld [vmem:[%s3 + $0x8] sm:$0xff]
    %v58 = vld [vmem:[#allocation3] sm:$0xff]
    %v59 = vld [vmem:[#allocation3 + $0x8] sm:$0xff]
    %v60 = vld [vmem:[#allocation3 + $0x10] sm:$0xff]
    %v61 = vld [vmem:[#allocation3 + $0x18] sm:$0xff]
    %v62 = vld [vmem:[#allocation3 + $0x20] sm:$0xff]
    %v63 = vld [vmem:[#allocation3 + $0x28] sm:$0xff]
    %v64 = vld [vmem:[#allocation3 + $0x30] sm:$0xff]
    %v65 = vld [vmem:[#allocation3 + $0x38] sm:$0xff]
    %v66 = vld [vmem:[#allocation3 + $0x40] sm:$0xff]
    %v67 = vld [vmem:[#allocation3 + $0x48] sm:$0xff]
    %v68 = vld [vmem:[#allocation3 + $0x50] sm:$0xff]
    %v69 = vld [vmem:[#allocation3 + $0x58] sm:$0xff]
    %v70 = vld [vmem:[#allocation3 + $0x60] sm:$0xff]
    %v71 = vld [vmem:[#allocation3 + $0x68] sm:$0xff]
    %v72 = vld [vmem:[#allocation3 + $0x70] sm:$0xff]
    %v73 = vld [vmem:[#allocation3 + $0x78] sm:$0xff]
    %v74 = vld [vmem:[#allocation3 + $0x80] sm:$0xff]
    %v75 = vld [vmem:[#allocation3 + $0x88] sm:$0xff]
    %v76 = vld [vmem:[#allocation3 + $0x90] sm:$0xff]
    %v77 = vld [vmem:[#allocation3 + $0x98] sm:$0xff]
    %v78 = vld [vmem:[#allocation3 + $0xa0] sm:$0xff]
    %v79 = vld [vmem:[#allocation3 + $0xa8] sm:$0xff]
    %v80 = vld [vmem:[#allocation3 + $0xb0] sm:$0xff]
    %v81 = vld [vmem:[#allocation3 + $0xb8] sm:$0xff]
    %v82 = vld [vmem:[#allocation3 + $0xc0] sm:$0xff]
    %v83 = vld [vmem:[#allocation3 + $0xc8] sm:$0xff]
    %v84 = vld [vmem:[#allocation3 + $0xd0] sm:$0xff]
    %v85 = vld [vmem:[#allocation3 + $0xd8] sm:$0xff]
    %v86 = vld [vmem:[#allocation3 + $0xe0] sm:$0xff]
    %v87 = vld [vmem:[#allocation3 + $0xe8] sm:$0xff]
    %v88 = vld [vmem:[#allocation3 + $0xf0] sm:$0xff]
    %v89 = vld [vmem:[#allocation3 + $0xf8] sm:$0xff]
    %vm90 = vcmask 261120
    %v92 = vsel %vm90, %v56, 0
    %v95 = vsel %vm90, %v57, 0
    %97 = vmatprep.subr.mxu0 %v59
    %98 = vmatpush1.msra.mxu0 %v58
    %99 = vmatprep.subr.mxu0 %v67
    %100 = vmatpush1.msra.mxu0 %v66
    %101 = vmatprep.subr.mxu0 %v75
    %102 = vmatpush1.msra.mxu0 %v74
    %103 = vmatprep.subr.mxu0 %v83
    %104 = vmatpush1.msra.mxu0 %v82
    %105 = vmatprep.subr.mxu0 0.0
    %106 = vmatpush1.msra.mxu0 0.0
    %107 = vmatprep.subr.mxu0 0.0
    %108 = vmatpush1.msra.mxu0 0.0
    %109 = vmatprep.subr.mxu0 0.0
    %110 = vmatpush1.msra.mxu0 0.0
    %111 = vmatprep.subr.mxu0 0.0
    %112 = vmatpush1.msra.mxu0 0.0
    %113 = vmatprep.subr.mxu0 0.0
    %114 = vmatpush1.msra.mxu0 0.0
    %115 = vmatprep.subr.mxu0 0.0
    %116 = vmatpush1.msra.mxu0 0.0
    %117 = vmatprep.subr.mxu0 0.0
    %118 = vmatpush1.msra.mxu0 0.0
    %119 = vmatprep.subr.mxu0 0.0
    %120 = vmatpush1.msra.mxu0 0.0
    %121 = vmatprep.subr.mxu0 0.0
    %122 = vmatpush1.msra.mxu0 0.0
    %123 = vmatprep.subr.mxu0 0.0
    %124 = vmatpush1.msra.mxu0 0.0
    %125 = vmatprep.subr.mxu0 0.0
    %126 = vmatpush1.msra.mxu0 0.0
    %127 = vmatprep.subr.mxu0 0.0
    %128 = vmatpush1.msra.mxu0 0.0
    %129 = vmatprep.subr.mxu0 0.0
    %130 = vmatpush1.msra.mxu0 0.0
    %131 = vmatprep.subr.mxu0 0.0
    %132 = vmatpush1.msra.mxu0 0.0
    %133 = vmatprep.subr.mxu0 0.0
    %134 = vmatpush1.msra.mxu0 0.0
    %135 = vmatprep.subr.mxu0 0.0
    %136 = vmatpush1.msra.mxu0 0.0
    %137 = vmatprep.subr.mxu0 0.0
    %138 = vmatpush1.msra.mxu0 0.0
    %139 = vmatprep.subr.mxu0 0.0
    %140 = vmatpush1.msra.mxu0 0.0
    %141 = vmatprep.subr.mxu0 0.0
    %142 = vmatpush1.msra.mxu0 0.0
    %143 = vmatprep.subr.mxu0 0.0
    %144 = vmatpush1.msra.mxu0 0.0
    %145 = vmatprep.subr.mxu0 0.0
    %146 = vmatpush1.msra.mxu0 0.0
    %147 = vmatprep.subr.mxu0 0.0
    %148 = vmatpush1.msra.mxu0 0.0
    %149 = vmatprep.subr.mxu0 0.0
    %150 = vmatpush1.msra.mxu0 0.0
    %151 = vmatprep.subr.mxu0 0.0
    %152 = vmatpush1.msra.mxu0 0.0
    %153 = vmatprep.subr.mxu0 0.0
    %154 = vmatpush1.msra.mxu0 0.0
    %155 = vmatprep.subr.mxu0 0.0
    %156 = vmatpush1.msra.mxu0 0.0
    %157 = vmatprep.subr.mxu0 0.0
    %158 = vmatpush1.msra.mxu0 0.0
    %159 = vmatprep.subr.mxu0 0.0
    %160 = vmatpush1.msra.mxu0 0.0
    %161 = vmatprep.mubr.f32.mxu0 0.0
    %162 = vmatmul.mubr.f32.gmra.mrb[0].mxu0 %v92
    %v163 = vpop.f32.mrb[0].mxu0
    %v164 = vadd.f32 0.0, %v163
    %v165 = vpop.f32.mrb[0].mxu0
    %v166 = vadd.f32 0.0, %v165
    %167 = vmatprep.mubr.f32.mxu0 0.0
    %168 = vmatmul.mubr.f32.gmra.mrb[0].mxu0 %v95
    %v169 = vpop.f32.mrb[0].mxu0
    %v170 = vadd.f32 0.0, %v169
    %v171 = vpop.f32.mrb[0].mxu0
    %v172 = vadd.f32 0.0, %v171
    %173 = vdwg.mxu0
    %174 = vmatprep.subr.mxu0 %v61
    %175 = vmatpush1.msra.mxu0 %v60
    %176 = vmatprep.subr.mxu0 %v69
    %177 = vmatpush1.msra.mxu0 %v68
    %178 = vmatprep.subr.mxu0 %v77
    %179 = vmatpush1.msra.mxu0 %v76
    %180 = vmatprep.subr.mxu0 %v85
    %181 = vmatpush1.msra.mxu0 %v84
    %182 = vmatprep.subr.mxu0 0.0
    %183 = vmatpush1.msra.mxu0 0.0
    %184 = vmatprep.subr.mxu0 0.0
    %185 = vmatpush1.msra.mxu0 0.0
    %186 = vmatprep.subr.mxu0 0.0
    %187 = vmatpush1.msra.mxu0 0.0
    %188 = vmatprep.subr.mxu0 0.0
    %189 = vmatpush1.msra.mxu0 0.0
    %190 = vmatprep.subr.mxu0 0.0
    %191 = vmatpush1.msra.mxu0 0.0
    %192 = vmatprep.subr.mxu0 0.0
    %193 = vmatpush1.msra.mxu0 0.0
    %194 = vmatprep.subr.mxu0 0.0
    %195 = vmatpush1.msra.mxu0 0.0
    %196 = vmatprep.subr.mxu0 0.0
    %197 = vmatpush1.msra.mxu0 0.0
    %198 = vmatprep.subr.mxu0 0.0
    %199 = vmatpush1.msra.mxu0 0.0
    %200 = vmatprep.subr.mxu0 0.0
    %201 = vmatpush1.msra.mxu0 0.0
    %202 = vmatprep.subr.mxu0 0.0
    %203 = vmatpush1.msra.mxu0 0.0
    %204 = vmatprep.subr.mxu0 0.0
    %205 = vmatpush1.msra.mxu0 0.0
    %206 = vmatprep.subr.mxu0 0.0
    %207 = vmatpush1.msra.mxu0 0.0
    %208 = vmatprep.subr.mxu0 0.0
    %209 = vmatpush1.msra.mxu0 0.0
    %210 = vmatprep.subr.mxu0 0.0
    %211 = vmatpush1.msra.mxu0 0.0
    %212 = vmatprep.subr.mxu0 0.0
    %213 = vmatpush1.msra.mxu0 0.0
    %214 = vmatprep.subr.mxu0 0.0
    %215 = vmatpush1.msra.mxu0 0.0
    %216 = vmatprep.subr.mxu0 0.0
    %217 = vmatpush1.msra.mxu0 0.0
    %218 = vmatprep.subr.mxu0 0.0
    %219 = vmatpush1.msra.mxu0 0.0
    %220 = vmatprep.subr.mxu0 0.0
    %221 = vmatpush1.msra.mxu0 0.0
    %222 = vmatprep.subr.mxu0 0.0
    %223 = vmatpush1.msra.mxu0 0.0
    %224 = vmatprep.subr.mxu0 0.0
    %225 = vmatpush1.msra.mxu0 0.0
    %226 = vmatprep.subr.mxu0 0.0
    %227 = vmatpush1.msra.mxu0 0.0
    %228 = vmatprep.subr.mxu0 0.0
    %229 = vmatpush1.msra.mxu0 0.0
    %230 = vmatprep.subr.mxu0 0.0
    %231 = vmatpush1.msra.mxu0 0.0
    %232 = vmatprep.subr.mxu0 0.0
    %233 = vmatpush1.msra.mxu0 0.0
    %234 = vmatprep.subr.mxu0 0.0
    %235 = vmatpush1.msra.mxu0 0.0
    %236 = vmatprep.subr.mxu0 0.0
    %237 = vmatpush1.msra.mxu0 0.0
    %238 = vmatprep.mubr.f32.mxu0 0.0
    %239 = vmatmul.mubr.f32.gmra.mrb[0].mxu0 %v92
    %v240 = vpop.f32.mrb[0].mxu0
    %v241 = vadd.f32 0.0, %v240
    %v242 = vpop.f32.mrb[0].mxu0
    %v243 = vadd.f32 0.0, %v242
    %244 = vmatprep.mubr.f32.mxu0 0.0
    %245 = vmatmul.mubr.f32.gmra.mrb[0].mxu0 %v95
    %v246 = vpop.f32.mrb[0].mxu0
    %v247 = vadd.f32 0.0, %v246
    %v248 = vpop.f32.mrb[0].mxu0
    %v249 = vadd.f32 0.0, %v248
    %250 = vdwg.mxu0
    %251 = vmatprep.subr.mxu0 %v63
    %252 = vmatpush1.msra.mxu0 %v62
    %253 = vmatprep.subr.mxu0 %v71
    %254 = vmatpush1.msra.mxu0 %v70
    %255 = vmatprep.subr.mxu0 %v79
    %256 = vmatpush1.msra.mxu0 %v78
    %257 = vmatprep.subr.mxu0 %v87
    %258 = vmatpush1.msra.mxu0 %v86
    %259 = vmatprep.subr.mxu0 0.0
    %260 = vmatpush1.msra.mxu0 0.0
    %261 = vmatprep.subr.mxu0 0.0
    %262 = vmatpush1.msra.mxu0 0.0
    %263 = vmatprep.subr.mxu0 0.0
    %264 = vmatpush1.msra.mxu0 0.0
    %265 = vmatprep.subr.mxu0 0.0
    %266 = vmatpush1.msra.mxu0 0.0
    %267 = vmatprep.subr.mxu0 0.0
    %268 = vmatpush1.msra.mxu0 0.0
    %269 = vmatprep.subr.mxu0 0.0
    %270 = vmatpush1.msra.mxu0 0.0
    %271 = vmatprep.subr.mxu0 0.0
    %272 = vmatpush1.msra.mxu0 0.0
    %273 = vmatprep.subr.mxu0 0.0
    %274 = vmatpush1.msra.mxu0 0.0
    %275 = vmatprep.subr.mxu0 0.0
    %276 = vmatpush1.msra.mxu0 0.0
    %277 = vmatprep.subr.mxu0 0.0
    %278 = vmatpush1.msra.mxu0 0.0
    %279 = vmatprep.subr.mxu0 0.0
    %280 = vmatpush1.msra.mxu0 0.0
    %281 = vmatprep.subr.mxu0 0.0
    %282 = vmatpush1.msra.mxu0 0.0
    %283 = vmatprep.subr.mxu0 0.0
    %284 = vmatpush1.msra.mxu0 0.0
    %285 = vmatprep.subr.mxu0 0.0
    %286 = vmatpush1.msra.mxu0 0.0
    %287 = vmatprep.subr.mxu0 0.0
    %288 = vmatpush1.msra.mxu0 0.0
    %289 = vmatprep.subr.mxu0 0.0
    %290 = vmatpush1.msra.mxu0 0.0
    %291 = vmatprep.subr.mxu0 0.0
    %292 = vmatpush1.msra.mxu0 0.0
    %293 = vmatprep.subr.mxu0 0.0
    %294 = vmatpush1.msra.mxu0 0.0
    %295 = vmatprep.subr.mxu0 0.0
    %296 = vmatpush1.msra.mxu0 0.0
    %297 = vmatprep.subr.mxu0 0.0
    %298 = vmatpush1.msra.mxu0 0.0
    %299 = vmatprep.subr.mxu0 0.0
    %300 = vmatpush1.msra.mxu0 0.0
    %301 = vmatprep.subr.mxu0 0.0
    %302 = vmatpush1.msra.mxu0 0.0
    %303 = vmatprep.subr.mxu0 0.0
    %304 = vmatpush1.msra.mxu0 0.0
    %305 = vmatprep.subr.mxu0 0.0
    %306 = vmatpush1.msra.mxu0 0.0
    %307 = vmatprep.subr.mxu0 0.0
    %308 = vmatpush1.msra.mxu0 0.0
    %309 = vmatprep.subr.mxu0 0.0
    %310 = vmatpush1.msra.mxu0 0.0
    %311 = vmatprep.subr.mxu0 0.0
    %312 = vmatpush1.msra.mxu0 0.0
    %313 = vmatprep.subr.mxu0 0.0
    %314 = vmatpush1.msra.mxu0 0.0
    %315 = vmatprep.mubr.f32.mxu0 0.0
    %316 = vmatmul.mubr.f32.gmra.mrb[0].mxu0 %v92
    %v317 = vpop.f32.mrb[0].mxu0
    %v318 = vadd.f32 0.0, %v317
    %v319 = vpop.f32.mrb[0].mxu0
    %v320 = vadd.f32 0.0, %v319
    %321 = vmatprep.mubr.f32.mxu0 0.0
    %322 = vmatmul.mubr.f32.gmra.mrb[0].mxu0 %v95
    %v323 = vpop.f32.mrb[0].mxu0
    %v324 = vadd.f32 0.0, %v323
    %v325 = vpop.f32.mrb[0].mxu0
    %v326 = vadd.f32 0.0, %v325
    %327 = vdwg.mxu0
    %328 = vmatprep.subr.mxu0 %v65
    %329 = vmatpush1.msra.mxu0 %v64
    %330 = vmatprep.subr.mxu0 %v73
    %331 = vmatpush1.msra.mxu0 %v72
    %332 = vmatprep.subr.mxu0 %v81
    %333 = vmatpush1.msra.mxu0 %v80
    %334 = vmatprep.subr.mxu0 %v89
    %335 = vmatpush1.msra.mxu0 %v88
    %336 = vmatprep.subr.mxu0 0.0
    %337 = vmatpush1.msra.mxu0 0.0
    %338 = vmatprep.subr.mxu0 0.0
    %339 = vmatpush1.msra.mxu0 0.0
    %340 = vmatprep.subr.mxu0 0.0
    %341 = vmatpush1.msra.mxu0 0.0
    %342 = vmatprep.subr.mxu0 0.0
    %343 = vmatpush1.msra.mxu0 0.0
    %344 = vmatprep.subr.mxu0 0.0
    %345 = vmatpush1.msra.mxu0 0.0
    %346 = vmatprep.subr.mxu0 0.0
    %347 = vmatpush1.msra.mxu0 0.0
    %348 = vmatprep.subr.mxu0 0.0
    %349 = vmatpush1.msra.mxu0 0.0
    %350 = vmatprep.subr.mxu0 0.0
    %351 = vmatpush1.msra.mxu0 0.0
    %352 = vmatprep.subr.mxu0 0.0
    %353 = vmatpush1.msra.mxu0 0.0
    %354 = vmatprep.subr.mxu0 0.0
    %355 = vmatpush1.msra.mxu0 0.0
    %356 = vmatprep.subr.mxu0 0.0
    %357 = vmatpush1.msra.mxu0 0.0
    %358 = vmatprep.subr.mxu0 0.0
    %359 = vmatpush1.msra.mxu0 0.0
    %360 = vmatprep.subr.mxu0 0.0
    %361 = vmatpush1.msra.mxu0 0.0
    %362 = vmatprep.subr.mxu0 0.0
    %363 = vmatpush1.msra.mxu0 0.0
    %364 = vmatprep.subr.mxu0 0.0
    %365 = vmatpush1.msra.mxu0 0.0
    %366 = vmatprep.subr.mxu0 0.0
    %367 = vmatpush1.msra.mxu0 0.0
    %368 = vmatprep.subr.mxu0 0.0
    %369 = vmatpush1.msra.mxu0 0.0
    %370 = vmatprep.subr.mxu0 0.0
    %371 = vmatpush1.msra.mxu0 0.0
    %372 = vmatprep.subr.mxu0 0.0
    %373 = vmatpush1.msra.mxu0 0.0
    %374 = vmatprep.subr.mxu0 0.0
    %375 = vmatpush1.msra.mxu0 0.0
    %376 = vmatprep.subr.mxu0 0.0
    %377 = vmatpush1.msra.mxu0 0.0
    %378 = vmatprep.subr.mxu0 0.0
    %379 = vmatpush1.msra.mxu0 0.0
    %380 = vmatprep.subr.mxu0 0.0
    %381 = vmatpush1.msra.mxu0 0.0
    %382 = vmatprep.subr.mxu0 0.0
    %383 = vmatpush1.msra.mxu0 0.0
    %384 = vmatprep.subr.mxu0 0.0
    %385 = vmatpush1.msra.mxu0 0.0
    %386 = vmatprep.subr.mxu0 0.0
    %387 = vmatpush1.msra.mxu0 0.0
    %388 = vmatprep.subr.mxu0 0.0
    %389 = vmatpush1.msra.mxu0 0.0
    %390 = vmatprep.subr.mxu0 0.0
    %391 = vmatpush1.msra.mxu0 0.0
    %392 = vmatprep.mubr.f32.mxu0 0.0
    %393 = vmatmul.mubr.f32.gmra.mrb[0].mxu0 %v92
    %v394 = vpop.f32.mrb[0].mxu0
    %v395 = vadd.f32 0.0, %v394
    %v396 = vpop.f32.mrb[0].mxu0
    %v397 = vadd.f32 0.0, %v396
    %398 = vmatprep.mubr.f32.mxu0 0.0
    %399 = vmatmul.mubr.f32.gmra.mrb[0].mxu0 %v95
    %v400 = vpop.f32.mrb[0].mxu0
    %v401 = vadd.f32 0.0, %v400
    %v402 = vpop.f32.mrb[0].mxu0
    %v403 = vadd.f32 0.0, %v402
    %404 = vdwg.mxu0
    %v405 = vld [vmem:[%s4] sm:$0xff]
    %v406 = vld [vmem:[%s4 + $0x8] sm:$0xff]
    %v407 = vld [vmem:[%s2] sm:$0xff]
    %409 = vset.pattern.permute.xlu0 0
    %410 = vperm.xlu0 %409, %v405
    %v411 = vpop.permute.xlu0 %410
    %414 = vset.pattern.permute.xlu0 0
    %415 = vperm.xlu0 %414, %v406
    %v416 = vpop.permute.xlu0 %415
    %v419 = vlaneseq
    %v420 = vshrl.u32 %v419, 7
    %v421 = vsub.s32 0, %v420
    %v422 = vrot.slane %v407, %v421
    %v423 = vlaneseq
    %v424 = vshrl.u32 %v423, 7
    %v425 = vsub.s32 1, %v424
    %v426 = vrot.slane %v407, %v425
    %v427 = vlaneseq
    %v428 = vshrl.u32 %v427, 7
    %v429 = vsub.s32 2, %v428
    %v430 = vrot.slane %v407, %v429
    %v431 = vlaneseq
    %v432 = vshrl.u32 %v431, 7
    %v433 = vsub.s32 3, %v432
    %v434 = vrot.slane %v407, %v433
    %v435 = vlaneseq
    %v436 = vshrl.u32 %v435, 7
    %v437 = vsub.s32 4, %v436
    %v438 = vrot.slane %v407, %v437
    %v439 = vlaneseq
    %v440 = vshrl.u32 %v439, 7
    %v441 = vsub.s32 5, %v440
    %v442 = vrot.slane %v407, %v441
    %v443 = vlaneseq
    %v444 = vshrl.u32 %v443, 7
    %v445 = vsub.s32 6, %v444
    %v446 = vrot.slane %v407, %v445
    %v447 = vlaneseq
    %v448 = vshrl.u32 %v447, 7
    %v449 = vsub.s32 7, %v448
    %v450 = vrot.slane %v407, %v449
    %v459 = vadd.f32 %v411, %v422
    %v460 = vadd.f32 %v411, %v426
    %v461 = vadd.f32 %v411, %v430
    %v462 = vadd.f32 %v411, %v434
    %v463 = vadd.f32 %v411, %v438
    %v464 = vadd.f32 %v411, %v442
    %v465 = vadd.f32 %v411, %v446
    %v466 = vadd.f32 %v411, %v450
    %v467 = vadd.f32 %v416, %v422
    %v468 = vadd.f32 %v416, %v426
    %v469 = vadd.f32 %v416, %v430
    %v470 = vadd.f32 %v416, %v434
    %v471 = vadd.f32 %v416, %v438
    %v472 = vadd.f32 %v416, %v442
    %v473 = vadd.f32 %v416, %v446
    %v474 = vadd.f32 %v416, %v450
    %v475 = vmul.f32 %v164, 2.0
    %v476 = vmul.f32 %v166, 2.0
    %v477 = vmul.f32 %v241, 2.0
    %v478 = vmul.f32 %v243, 2.0
    %v479 = vmul.f32 %v318, 2.0
    %v480 = vmul.f32 %v320, 2.0
    %v481 = vmul.f32 %v395, 2.0
    %v482 = vmul.f32 %v397, 2.0
    %v483 = vmul.f32 %v170, 2.0
    %v484 = vmul.f32 %v172, 2.0
    %v485 = vmul.f32 %v247, 2.0
    %v486 = vmul.f32 %v249, 2.0
    %v487 = vmul.f32 %v324, 2.0
    %v488 = vmul.f32 %v326, 2.0
    %v489 = vmul.f32 %v401, 2.0
    %v490 = vmul.f32 %v403, 2.0
    %v491 = vsub.f32 %v459, %v475
    %v492 = vsub.f32 %v460, %v476
    %v493 = vsub.f32 %v461, %v477
    %v494 = vsub.f32 %v462, %v478
    %v495 = vsub.f32 %v463, %v479
    %v496 = vsub.f32 %v464, %v480
    %v497 = vsub.f32 %v465, %v481
    %v498 = vsub.f32 %v466, %v482
    %v499 = vsub.f32 %v467, %v483
    %v500 = vsub.f32 %v468, %v484
    %v501 = vsub.f32 %v469, %v485
    %v502 = vsub.f32 %v470, %v486
    %v503 = vsub.f32 %v471, %v487
    %v504 = vsub.f32 %v472, %v488
    %v505 = vsub.f32 %v473, %v489
    %v506 = vsub.f32 %v474, %v490
    %v507 = vmax.f32 %v491, 0.0
    %v508 = vmax.f32 %v492, 0.0
    %v509 = vmax.f32 %v493, 0.0
    %v510 = vmax.f32 %v494, 0.0
    %v511 = vmax.f32 %v495, 0.0
    %v512 = vmax.f32 %v496, 0.0
    %v513 = vmax.f32 %v497, 0.0
    %v514 = vmax.f32 %v498, 0.0
    %v515 = vmax.f32 %v499, 0.0
    %v516 = vmax.f32 %v500, 0.0
    %v517 = vmax.f32 %v501, 0.0
    %v518 = vmax.f32 %v502, 0.0
    %v519 = vmax.f32 %v503, 0.0
    %v520 = vmax.f32 %v504, 0.0
    %v521 = vmax.f32 %v505, 0.0
    %v522 = vmax.f32 %v506, 0.0
    %s523 = sld [smem:[#allocation2]]
    %v524 = vmul.f32 %v507, -0.5
    %v525 = vmul.f32 %v508, -0.5
    %v526 = vmul.f32 %v509, -0.5
    %v527 = vmul.f32 %v510, -0.5
    %v528 = vmul.f32 %v511, -0.5
    %v529 = vmul.f32 %v512, -0.5
    %v530 = vmul.f32 %v513, -0.5
    %v531 = vmul.f32 %v514, -0.5
    %v532 = vmul.f32 %v515, -0.5
    %v533 = vmul.f32 %v516, -0.5
    %v534 = vmul.f32 %v517, -0.5
    %v535 = vmul.f32 %v518, -0.5
    %v536 = vmul.f32 %v519, -0.5
    %v537 = vmul.f32 %v520, -0.5
    %v538 = vmul.f32 %v521, -0.5
    %v539 = vmul.f32 %v522, -0.5
    %v540 = vmul.f32 %v524, 1.442695
    %v541 = vpow.pop %v540
    %v542 = vmul.f32 %v525, 1.442695
    %v543 = vpow.pop %v542
    %v544 = vmul.f32 %v526, 1.442695
    %v545 = vpow.pop %v544
    %v546 = vmul.f32 %v527, 1.442695
    %v547 = vpow.pop %v546
    %v548 = vmul.f32 %v528, 1.442695
    %v549 = vpow.pop %v548
    %v550 = vmul.f32 %v529, 1.442695
    %v551 = vpow.pop %v550
    %v552 = vmul.f32 %v530, 1.442695
    %v553 = vpow.pop %v552
    %v554 = vmul.f32 %v531, 1.442695
    %v555 = vpow.pop %v554
    %v556 = vmul.f32 %v532, 1.442695
    %v557 = vpow.pop %v556
    %v558 = vmul.f32 %v533, 1.442695
    %v559 = vpow.pop %v558
    %v560 = vmul.f32 %v534, 1.442695
    %v561 = vpow.pop %v560
    %v562 = vmul.f32 %v535, 1.442695
    %v563 = vpow.pop %v562
    %v564 = vmul.f32 %v536, 1.442695
    %v565 = vpow.pop %v564
    %v566 = vmul.f32 %v537, 1.442695
    %v567 = vpow.pop %v566
    %v568 = vmul.f32 %v538, 1.442695
    %v569 = vpow.pop %v568
    %v570 = vmul.f32 %v539, 1.442695
    %v571 = vpow.pop %v570
    %v572 = vstv %s523
    %v573 = vmul.f32 %v572, %v541
    %v574 = vmul.f32 %v572, %v543
    %v575 = vmul.f32 %v572, %v545
    %v576 = vmul.f32 %v572, %v547
    %v577 = vmul.f32 %v572, %v549
    %v578 = vmul.f32 %v572, %v551
    %v579 = vmul.f32 %v572, %v553
    %v580 = vmul.f32 %v572, %v555
    %v581 = vmul.f32 %v572, %v557
    %v582 = vmul.f32 %v572, %v559
    %v583 = vmul.f32 %v572, %v561
    %v584 = vmul.f32 %v572, %v563
    %v585 = vmul.f32 %v572, %v565
    %v586 = vmul.f32 %v572, %v567
    %v587 = vmul.f32 %v572, %v569
    %v588 = vmul.f32 %v572, %v571
    %v589 = vld [vmem:[#allocation6] sm:$0xff]
    %v590 = vld [vmem:[#allocation6 + $0x8] sm:$0xff]
    %v591 = vld [vmem:[#allocation6 + $0x10] sm:$0xff]
    %v592 = vld [vmem:[#allocation6 + $0x18] sm:$0xff]
    %v593 = vld [vmem:[#allocation6 + $0x20] sm:$0xff]
    %v594 = vld [vmem:[#allocation6 + $0x28] sm:$0xff]
    %v595 = vld [vmem:[#allocation6 + $0x30] sm:$0xff]
    %v596 = vld [vmem:[#allocation6 + $0x38] sm:$0xff]
    %v597 = vld [vmem:[#allocation6 + $0x40] sm:$0xff]
    %v598 = vld [vmem:[#allocation6 + $0x48] sm:$0xff]
    %v599 = vld [vmem:[#allocation6 + $0x50] sm:$0xff]
    %v600 = vld [vmem:[#allocation6 + $0x58] sm:$0xff]
    %v601 = vld [vmem:[#allocation6 + $0x60] sm:$0xff]
    %v602 = vld [vmem:[#allocation6 + $0x68] sm:$0xff]
    %v603 = vld [vmem:[#allocation6 + $0x70] sm:$0xff]
    %v604 = vld [vmem:[#allocation6 + $0x78] sm:$0xff]
    %v605 = vmul.f32 %v573, 0.5
    %v606 = vmul.f32 %v574, 0.5
    %v607 = vmul.f32 %v575, 0.5
    %v608 = vmul.f32 %v576, 0.5
    %v609 = vmul.f32 %v577, 0.5
    %v610 = vmul.f32 %v578, 0.5
    %v611 = vmul.f32 %v579, 0.5
    %v612 = vmul.f32 %v580, 0.5
    %v613 = vmul.f32 %v581, 0.5
    %v614 = vmul.f32 %v582, 0.5
    %v615 = vmul.f32 %v583, 0.5
    %v616 = vmul.f32 %v584, 0.5
    %v617 = vmul.f32 %v585, 0.5
    %v618 = vmul.f32 %v586, 0.5
    %v619 = vmul.f32 %v587, 0.5
    %v620 = vmul.f32 %v588, 0.5
    %v621 = vsub.f32 %v589, %v605
    %v622 = vsub.f32 %v590, %v606
    %v623 = vsub.f32 %v591, %v607
    %v624 = vsub.f32 %v592, %v608
    %v625 = vsub.f32 %v593, %v609
    %v626 = vsub.f32 %v594, %v610
    %v627 = vsub.f32 %v595, %v611
    %v628 = vsub.f32 %v596, %v612
    %v629 = vsub.f32 %v597, %v613
    %v630 = vsub.f32 %v598, %v614
    %v631 = vsub.f32 %v599, %v615
    %v632 = vsub.f32 %v600, %v616
    %v633 = vsub.f32 %v601, %v617
    %v634 = vsub.f32 %v602, %v618
    %v635 = vsub.f32 %v603, %v619
    %v636 = vsub.f32 %v604, %v620
    %v637 = vmul.f32 %v573, %v621
    %v638 = vmul.f32 %v574, %v622
    %v639 = vmul.f32 %v575, %v623
    %v640 = vmul.f32 %v576, %v624
    %v641 = vmul.f32 %v577, %v625
    %v642 = vmul.f32 %v578, %v626
    %v643 = vmul.f32 %v579, %v627
    %v644 = vmul.f32 %v580, %v628
    %v645 = vmul.f32 %v581, %v629
    %v646 = vmul.f32 %v582, %v630
    %v647 = vmul.f32 %v583, %v631
    %v648 = vmul.f32 %v584, %v632
    %v649 = vmul.f32 %v585, %v633
    %v650 = vmul.f32 %v586, %v634
    %v651 = vmul.f32 %v587, %v635
    %v652 = vmul.f32 %v588, %v636
    %653 = vst [vmem:[#allocation8] sm:$0xff] %v637
    %654 = vst [vmem:[#allocation8 + $0x8] sm:$0xff] %v638
    %655 = vst [vmem:[#allocation8 + $0x10] sm:$0xff] %v639
    %656 = vst [vmem:[#allocation8 + $0x18] sm:$0xff] %v640
    %657 = vst [vmem:[#allocation8 + $0x20] sm:$0xff] %v641
    %658 = vst [vmem:[#allocation8 + $0x28] sm:$0xff] %v642
    %659 = vst [vmem:[#allocation8 + $0x30] sm:$0xff] %v643
    %660 = vst [vmem:[#allocation8 + $0x38] sm:$0xff] %v644
    %661 = vst [vmem:[#allocation8 + $0x40] sm:$0xff] %v645
    %662 = vst [vmem:[#allocation8 + $0x48] sm:$0xff] %v646
    %663 = vst [vmem:[#allocation8 + $0x50] sm:$0xff] %v647
    %664 = vst [vmem:[#allocation8 + $0x58] sm:$0xff] %v648
    %665 = vst [vmem:[#allocation8 + $0x60] sm:$0xff] %v649
    %666 = vst [vmem:[#allocation8 + $0x68] sm:$0xff] %v650
    %667 = vst [vmem:[#allocation8 + $0x70] sm:$0xff] %v651
    %668 = vst [vmem:[#allocation8 + $0x78] sm:$0xff] %v652
    %669 = vst [vmem:[#allocation9] sm:$0xff] %v573
    %670 = vst [vmem:[#allocation9 + $0x8] sm:$0xff] %v574
    %671 = vst [vmem:[#allocation9 + $0x10] sm:$0xff] %v575
    %672 = vst [vmem:[#allocation9 + $0x18] sm:$0xff] %v576
    %673 = vst [vmem:[#allocation9 + $0x20] sm:$0xff] %v577
    %674 = vst [vmem:[#allocation9 + $0x28] sm:$0xff] %v578
    %675 = vst [vmem:[#allocation9 + $0x30] sm:$0xff] %v579
    %676 = vst [vmem:[#allocation9 + $0x38] sm:$0xff] %v580
    %677 = vst [vmem:[#allocation9 + $0x40] sm:$0xff] %v581
    %678 = vst [vmem:[#allocation9 + $0x48] sm:$0xff] %v582
    %679 = vst [vmem:[#allocation9 + $0x50] sm:$0xff] %v583
    %680 = vst [vmem:[#allocation9 + $0x58] sm:$0xff] %v584
    %681 = vst [vmem:[#allocation9 + $0x60] sm:$0xff] %v585
    %682 = vst [vmem:[#allocation9 + $0x68] sm:$0xff] %v586
    %683 = vst [vmem:[#allocation9 + $0x70] sm:$0xff] %v587
    %684 = vst [vmem:[#allocation9 + $0x78] sm:$0xff] %v588
    // Predicated region
    $region34: #{tpu_custom_call.1} parent=1 // pred_check
      _
    $region35: #{tpu_custom_call.1} parent=1 // pred_check_branch
      %686 = sbr.rel (0) target = $region37
    $region36: #{tpu_custom_call.1} parent=1 // pred_region
      %s688 = ssub.s32 2048, 2048
      %689 = vsyncadd [#allocation5], %s688
      %s690 = sshll.u32 [#allocation8], 4
      %s691 = int_to_ptr.vmem [resolvable:$true] %s690
      %696 = dma.vmem_to_hbm [thread:$0]  %s691, 2048, %s6, [#allocation5], 1024, 1024, 64
    $region37: #{tpu_custom_call.1} parent=1 // pred_fallthru
      _
    // Predicated region
    $region38: #{tpu_custom_call.1} parent=1 // pred_check
      _
    $region39: #{tpu_custom_call.1} parent=1 // pred_check_branch
      %698 = sbr.rel (0) target = $region41
    $region40: #{tpu_custom_call.1} parent=1 // pred_region
      %s700 = ssub.s32 2048, 2048
      %701 = vsyncadd [#allocation10], %s700
      %s702 = sshll.u32 [#allocation9], 4
      %s703 = int_to_ptr.vmem [resolvable:$true] %s702
      %708 = dma.vmem_to_hbm [thread:$0]  %s703, 2048, %s7, [#allocation10], 1024, 1024, 64
    $region41: #{tpu_custom_call.1} parent=1 // pred_fallthru
      _
    // Predicated region
    $region42: #{tpu_custom_call.1} parent=1 // pred_check
      _
    $region43: #{tpu_custom_call.1} parent=1 // pred_check_branch
      %710 = sbr.rel (0) target = $region45
    $region44: #{tpu_custom_call.1} parent=1 // pred_region
      %711 = dma.done [#allocation5], 2048
    $region45: #{tpu_custom_call.1} parent=1 // pred_fallthru
      _
    // Predicated region
    $region46: #{tpu_custom_call.1} parent=1 // pred_check
      _
    $region47: #{tpu_custom_call.1} parent=1 // pred_check_branch
      %713 = sbr.rel (0) target = $region49
    $region48: #{tpu_custom_call.1} parent=1 // pred_region
      %714 = dma.done [#allocation10], 2048
    $region49: #{tpu_custom_call.1} parent=1 // pred_fallthru
      _
    %715 = vsyncpa [#allocation4], 1
    %716 = vsyncpa [#allocation7], 1
    %717 = vsyncpa [#allocation5], 1
    %718 = vsyncpa [#allocation10], 1

</llo_original>
